<compile_context>
chip_gen: v5e
topology: v5e:2x2
jax: 0.10.0
libtpu: 0.0.40
codegen_flags: <defaults>
</compile_context>

<pallas_src>
import functools

import jax
import jax.numpy as jnp
import numpy as np
from jax.experimental import pallas as pl
from jax.experimental.pallas import tpu as pltpu

_HIGHEST = jax.lax.Precision.HIGHEST


# ----------------------------------------------------------------------------
# per-chip VMEM / tile budgets
# ----------------------------------------------------------------------------
def _vmem_capacity_bytes():
    """Physical VMEM per TensorCore (128 MiB v5e/v6e, 64 MiB v7x)."""
    try:
        info = pltpu.get_tpu_info()
        for name in ("vmem_capacity_bytes", "vmem_size_bytes", "vmem_bytes"):
            v = getattr(info, name, None)
            if v:
                return int(v)
    except Exception:
        pass
    # Conservative fallback (safe on every generation including v7x).
    return 64 * 1024 * 1024


_VMEM_CAP = _vmem_capacity_bytes()
# ~25% headroom for compiler internal scratch / regalloc:
#   64 MiB (v7x) -> 48 MiB limit;  128 MiB (v5e/v6e) -> 96 MiB limit.
_VMEM_LIMIT = min(int(_VMEM_CAP * 3 // 4), 110 * 1024 * 1024)

# Stage-1 (HBM-read-bound) input block budget *per buffer* (double-buffered by
# BlockSpec).  v7x HBM (~3.2 TB/s) needs ~16 MiB blocks to amortize the
# ~0.35 us per-grid-step overhead; v5e/v6e are near roofline at ~8 MiB.
_POOL_BLOCK_BUDGET = (16 * 1024 * 1024 if _VMEM_CAP <= 72 * 1024 * 1024
                      else 8 * 1024 * 1024)
# TODO(synk): on 128-MiB chips, pipeline_mode=pl.Buffered(3) on the stage-1
#             input BlockSpec would hide DMA issue latency for a few extra %.


def _pick_h_tile(H, bytes_per_h_row, budget):
    """Largest multiple-of-8 H tile fitting the budget (or full H).  The tail
    tile of a non-dividing H is handled by in-kernel masking (cdiv grid)."""
    max_th = max(1, budget // max(bytes_per_h_row, 1))
    if H <= max_th:
        return H
    return max(8, (max_th // 8) * 8)


def _pick_row_tile(rows, H, W, out_itemsize, budget):
    """Stage-3 row tile, budgeted against the real per-row VMEM footprint:
    double-buffered (TB, H*W) output block, double-buffered (TB,H)/(TB,W) f32
    inputs, and the small in-kernel f32 temporaries."""
    bytes_per_row = (2 * H * W * out_itemsize      # double-buffered output block
                     + 2 * (H + W) * 4             # double-buffered oh/ow blocks
                     + 4 * W * 4)                  # per-column f32 temporaries
    if rows <= 8:
        return rows
    t = (budget // max(bytes_per_row, 1)) // 8 * 8
    return int(min(rows, max(8, t)))


# ----------------------------------------------------------------------------
# Stage 1: tiled coordinate pooling (dominant HBM read stream)
# ----------------------------------------------------------------------------
def _pool_kernel(x_ref, xh_ref, xw_ref, *, inv_w, H, TH, accumulate):
    t = pl.program_id(1)
    xt = x_ref[0]                                     # (C, TH, W), native dtype

    # mean over W: complete within this H tile -> write its (TH, C) slice.
    # Rows >= H of the tail tile land outside the (N, H, C) output -> dropped.
    sh = jnp.sum(xt, axis=2, dtype=jnp.float32)       # (C, TH), f32 accumulation
    xh_ref[0] = sh.T * inv_w                          # (TH, C), channels-last

    # sum over H: rows of the tail tile past H must not pollute the sum.
    if H % TH != 0:
        h_ids = t * TH + jax.lax.broadcasted_iota(jnp.int32, (1, TH, 1), 1)
        xt = jnp.where(h_ids < H, xt, jnp.zeros_like(xt))
    sw = jnp.sum(xt, axis=1, dtype=jnp.float32)       # (C, W)

    if accumulate:
        # H grid axis is "arbitrary": (1,1,W,C) output block resident across t.
        @pl.when(t == 0)
        def _():
            xw_ref[0, 0] = jnp.zeros(xw_ref.shape[2:], dtype=xw_ref.dtype)
        xw_ref[0, 0] += sw.T                          # (W, C)
    else:
        # H grid axis is "parallel" (megacore when N < #cores): each tile writes
        # its own partial sum; the tiny cross-tile reduction happens in stage 2.
        xw_ref[0, 0] = sw.T


def _coord_pool(x, h_parallel, block_budget):
    N, C, H, W = x.shape
    TH = _pick_h_tile(H, C * W * x.dtype.itemsize, block_budget)
    nT = pl.cdiv(H, TH)
    n_w_blocks = nT if h_parallel else 1
    sem_t = "parallel" if h_parallel else "arbitrary"

    if h_parallel:
        xw_index_map = lambda n, t: (n, t, 0, 0)
    else:
        xw_index_map = lambda n, t: (n, 0, 0, 0)

    return pl.pallas_call(
        functools.partial(_pool_kernel, inv_w=1.0 / W, H=H, TH=TH,
                          accumulate=not h_parallel),
        grid=(N, nT),
        in_specs=[pl.BlockSpec((1, C, TH, W), lambda n, t: (n, 0, t, 0))],
        out_specs=(pl.BlockSpec((1, TH, C), lambda n, t: (n, t, 0)),
                   pl.BlockSpec((1, 1, W, C), xw_index_map)),
        out_shape=(jax.ShapeDtypeStruct((N, H, C), jnp.float32),
                   jax.ShapeDtypeStruct((N, n_w_blocks, W, C), jnp.float32)),
        compiler_params=pltpu.CompilerParams(
            dimension_semantics=("parallel", sem_t),
            vmem_limit_bytes=_VMEM_LIMIT),
    )(x)


# ----------------------------------------------------------------------------
# Stage 2: conv1 + BN + h_swish + conv2/conv3 + sigmoid on tiny row matrices
# ----------------------------------------------------------------------------
def _attn_vec_kernel(xh_ref, xw_ref, w1t_ref, b1_ref, g_ref, be_ref,
                     w2t_ref, b2_ref, w3t_ref, b3_ref, oh_ref, ow_ref, *, inv_cnt):
    w1t = w1t_ref[...]                                # (C, TCP) pre-transposed+padded
    b1 = b1_ref[...]                                  # (1, TCP)
    yh = jnp.dot(xh_ref[...], w1t, preferred_element_type=jnp.float32,
                 precision=_HIGHEST) + b1             # (N*H, TCP)
    yw = jnp.dot(xw_ref[...], w1t, preferred_element_type=jnp.float32,
                 precision=_HIGHEST) + b1             # (N*W, TCP)

    # BatchNorm2d (training mode): batch stats over all N*(H+W) positions.
    # Two-pass (centered) variance avoids catastrophic cancellation.
    mean = (jnp.sum(yh, axis=0, keepdims=True)
            + jnp.sum(yw, axis=0, keepdims=True)) * inv_cnt
    dh = yh - mean
    dw = yw - mean
    var = (jnp.sum(dh * dh, axis=0, keepdims=True)
           + jnp.sum(dw * dw, axis=0, keepdims=True)) * inv_cnt
    scale = g_ref[...] * jax.lax.rsqrt(var + 1e-5)    # EUP rsqrt
    shift = be_ref[...]
    yh = dh * scale + shift
    yw = dw * scale + shift

    # h_swish: x * relu6(x + 3) / 6
    yh = yh * jnp.clip(yh + 3.0, 0.0, 6.0) * (1.0 / 6.0)
    yw = yw * jnp.clip(yw + 3.0, 0.0, 6.0) * (1.0 / 6.0)

    oh_ref[...] = jax.nn.sigmoid(
        jnp.dot(yh, w2t_ref[...], preferred_element_type=jnp.float32,
                precision=_HIGHEST) + b2_ref[...])    # (N*H, O)
    ow_ref[...] = jax.nn.sigmoid(
        jnp.dot(yw, w3t_ref[...], preferred_element_type=jnp.float32,
                precision=_HIGHEST) + b3_ref[...])    # (N*W, O)


# ----------------------------------------------------------------------------
# Stage 3: lane-dense broadcast multiply (dominant HBM write stream)
# ----------------------------------------------------------------------------
def _bcast_kernel(oh_ref, ow_ref, out_ref, *, W):
    # out[r, h*W + w] = oh[r, h] * ow[r, w]  -- pure VPU broadcast-multiply.
    # No expansion matrices / MXU passes / extra HBM reads (perf-review fix).
    # The HBM writeback DMAs the full lane-dense (TB, H*W) block regardless of
    # the per-h store width below.
    H = oh_ref.shape[1]
    ow = ow_ref[...]                                  # (TB, W) f32
    # TODO(synk): for very large H switch this unrolled loop to pl.loop + pl.ds
    #             to bound generated code size.
    for h in range(H):
        out_ref[:, h * W:(h + 1) * W] = (oh_ref[:, h:h + 1] * ow).astype(out_ref.dtype)


def _coord_broadcast(oh2, ow2, H, W, out_dtype, block_budget):
    rows = oh2.shape[0]
    HW = H * W
    TB = _pick_row_tile(rows, H, W, jnp.dtype(out_dtype).itemsize, block_budget)
    return pl.pallas_call(
        functools.partial(_bcast_kernel, W=W),
        grid=(pl.cdiv(rows, TB),),
        in_specs=[pl.BlockSpec((TB, H), lambda i: (i, 0)),
                  pl.BlockSpec((TB, W), lambda i: (i, 0))],
        out_specs=pl.BlockSpec((TB, HW), lambda i: (i, 0)),
        out_shape=jax.ShapeDtypeStruct((rows, HW), out_dtype),
        compiler_params=pltpu.CompilerParams(
            dimension_semantics=("parallel",),
            vmem_limit_bytes=_VMEM_LIMIT),
    )(oh2, ow2)


# ----------------------------------------------------------------------------
# wrapper
# ----------------------------------------------------------------------------
def coord_attention(x, params, out_channels, *,
                    pool_block_budget=None, bcast_block_budget=None):
    N, C, H, W = x.shape
    O = out_channels
    f32 = jnp.float32
    pool_budget = _POOL_BLOCK_BUDGET if pool_block_budget is None else pool_block_budget
    bcast_budget = (_VMEM_LIMIT // 2) if bcast_block_budget is None else bcast_block_budget

    # ---- stage 1: tiled coordinate pooling (dominant HBM read stream) ----
    # When the batch axis can't feed both TensorCores, shard the H axis instead
    # (partial x_w sums per tile, reduced below).
    pooled_h, pooled_w = _coord_pool(x, h_parallel=(N < 2), block_budget=pool_budget)

    # tiny glue (KB-sized): fold per-tile partial sums, present channels-last rows
    xh_rows = pooled_h.reshape(N * H, C)                                # (N*H, C)
    xw_rows = (jnp.sum(pooled_w, axis=1) * (1.0 / H)).reshape(N * W, C)  # (N*W, C)

    # ---- stage 2: attention vectors (tiny, grid-less) ----
    TC = params["w1"].shape[0]
    TCP = ((TC + 127) // 128) * 128            # pad hidden dim to full MXU lane width
    pad = TCP - TC
    w1t = jnp.pad(params["w1"].T, ((0, 0), (0, pad)))      # (C, TCP)
    b1 = jnp.pad(params["b1"], ((0, 0), (0, pad)))
    gam = jnp.pad(params["gamma"], ((0, 0), (0, pad)))     # pad gamma/beta with 0 so
    bet = jnp.pad(params["beta"], ((0, 0), (0, pad)))      # padded channels stay 0
    w2t = jnp.pad(params["w2"].T, ((0, pad), (0, 0)))      # (TCP, O)
    w3t = jnp.pad(params["w3"].T, ((0, pad), (0, 0)))

    # TODO(synk): tile stage 2 over N (two-pass BN stats across tiles) once
    #             N*(H+W)*max(C,TCP)*4 bytes approaches the per-chip VMEM limit.
    vmem = pl.BlockSpec(memory_space=pltpu.MemorySpace.VMEM)
    oh_rows, ow_rows = pl.pallas_call(
        functools.partial(_attn_vec_kernel, inv_cnt=1.0 / (N * (H + W))),
        in_specs=[vmem] * 10,
        out_specs=(vmem, vmem),
        out_shape=(jax.ShapeDtypeStruct((N * H, O), f32),
                   jax.ShapeDtypeStruct((N * W, O), f32)),
        compiler_params=pltpu.CompilerParams(vmem_limit_bytes=_VMEM_LIMIT),
    )(xh_rows, xw_rows, w1t, b1, gam, bet, w2t, params["b2"], w3t, params["b3"])

    # tiny layout glue so stage 3 can tile plain (N*O) rows (XLA, KB-sized)
    oh2 = jnp.transpose(oh_rows.reshape(N, H, O), (0, 2, 1)).reshape(N * O, H)
    ow2 = jnp.transpose(ow_rows.reshape(N, W, O), (0, 2, 1)).reshape(N * O, W)

    # ---- stage 3: broadcast multiply, tiled over N*O rows, lane-dense output ----
    out_flat = _coord_broadcast(oh2, ow2, H, W, x.dtype, bcast_budget)
    return out_flat.reshape(N, O, H, W)   # contiguous reshape, free in XLA


# ----------------------------------------------------------------------------
# pure-JAX reference mirroring the PyTorch forward (training-mode BN)
# ----------------------------------------------------------------------------
def coord_attention_reference(x, params):
    N, C, H, W = x.shape
    xh = jnp.mean(x, axis=3, keepdims=True)                    # (N,C,H,1)
    xw = jnp.mean(x, axis=2, keepdims=True)                    # (N,C,1,W)
    xw = jnp.transpose(xw, (0, 1, 3, 2))                       # (N,C,W,1)
    xcat = jnp.concatenate([xh, xw], axis=2)                   # (N,C,H+W,1)
    y = jnp.einsum('tc,ncsl->ntsl', params["w1"], xcat,
                   precision=_HIGHEST) + params["b1"].reshape(1, -1, 1, 1)
    mean = jnp.mean(y, axis=(0, 2, 3), keepdims=True)
    var = jnp.mean((y - mean) ** 2, axis=(0, 2, 3), keepdims=True)
    y = (y - mean) * jax.lax.rsqrt(var + 1e-5) * params["gamma"].reshape(1, -1, 1, 1) \
        + params["beta"].reshape(1, -1, 1, 1)
    y = y * jnp.clip(y + 3.0, 0.0, 6.0) / 6.0                  # h_swish
    yh, yw = y[:, :, :H], y[:, :, H:]                          # (N,TC,H,1), (N,TC,W,1)
    yw = jnp.transpose(yw, (0, 1, 3, 2))                       # (N,TC,1,W)
    oh = jax.nn.sigmoid(jnp.einsum('ot,ntsl->nosl', params["w2"], yh, precision=_HIGHEST)
                        + params["b2"].reshape(1, -1, 1, 1))   # (N,O,H,1)
    ow = jax.nn.sigmoid(jnp.einsum('ot,ntlw->nolw', params["w3"], yw, precision=_HIGHEST)
                        + params["b3"].reshape(1, -1, 1, 1))   # (N,O,1,W)
    return ow * oh


def init_params(key, in_channels, out_channels, reduction=32):
    temp_c = max(8, in_channels // reduction)
    k = jax.random.split(key, 6)
    return {
        "w1": jax.random.normal(k[0], (temp_c, in_channels), jnp.float32) * 0.2,
        "b1": jax.random.normal(k[1], (1, temp_c), jnp.float32) * 0.1,
        "gamma": jnp.ones((1, temp_c), jnp.float32),
        "beta": jnp.zeros((1, temp_c), jnp.float32),
        "w2": jax.random.normal(k[2], (out_channels, temp_c), jnp.float32) * 0.2,
        "b2": jax.random.normal(k[3], (1, out_channels), jnp.float32) * 0.1,
        "w3": jax.random.normal(k[4], (out_channels, temp_c), jnp.float32) * 0.2,
        "b3": jax.random.normal(k[5], (1, out_channels), jnp.float32) * 0.1,
    }


if __name__ == "__main__":
    key = jax.random.PRNGKey(0)

    # (N, C, H, W, O, pool_block_budget, bcast_block_budget)
    cases = [
        # main demo: batch-parallel accumulate path, untiled H
        (2, 4, 16, 16, 4, None, None),
        # small-batch path: H-parallel partial sums + masked tail + stage-3 row tiling
        (1, 4, 24, 16, 12, 4096, 1),
        # accumulate path with multiple H tiles + masked tail
        (2, 4, 24, 16, 4, 4096, None),
    ]

    for idx, (N, C, H, W, O, pb, bb) in enumerate(cases):
        kx, kp = jax.random.split(jax.random.fold_in(key, idx))
        x = jax.random.normal(kx, (N, C, H, W), jnp.float32)
        params = init_params(kp, in_channels=C, out_channels=O)

        out = jax.block_until_ready(
            coord_attention(x, params, O, pool_block_budget=pb, bcast_block_budget=bb))
        ref = jax.block_until_ready(coord_attention_reference(x, params))

        assert out.shape == (N, O, H, W)
        np.testing.assert_allclose(np.asarray(out), np.asarray(ref),
                                   atol=2e-5, rtol=2e-5)

    print("KERNEL_OK")
</pallas_src>

<mosaic_0001>
module attributes {stable_mosaic.version = 11 : i64} {
  func.func @_pool_kernel(%arg0: i32, %arg1: i32, %arg2: memref<1x4x16x16xf32, #tpu.memory_space<vmem>>, %arg3: memref<1x16x4xf32, #tpu.memory_space<vmem>>, %arg4: memref<1x1x16x4xf32, #tpu.memory_space<vmem>>) attributes {dimension_semantics = [#tpu.dimension_semantics<parallel>, #tpu.dimension_semantics<arbitrary>], iteration_bounds = array<i64: 2, 1>, scalar_prefetch = 0 : i64, scratch_operands = 0 : i64, tpu.core_type = #tpu.core_type<tc>, window_params = [{transform_indices = @transform_0, window_bounds = array<i64: 1, 4, 16, 16>}, {transform_indices = @transform_1, window_bounds = array<i64: 1, 16, 4>}, {transform_indices = @transform_2, window_bounds = array<i64: 1, 1, 16, 4>}]} {
    %c0 = arith.constant 0 : index
    %c0_0 = arith.constant 0 : index
    %c0_1 = arith.constant 0 : index
    %c0_2 = arith.constant 0 : index
    %0 = vector.load %arg2[%c0, %c0_0, %c0_1, %c0_2] : memref<1x4x16x16xf32, #tpu.memory_space<vmem>>, vector<1x4x16x16xf32>
    %1 = vector.shape_cast %0 : vector<1x4x16x16xf32> to vector<4x16x16xf32>
    %cst = arith.constant dense<0.000000e+00> : vector<4x16xf32>
    %2 = vector.multi_reduction <add>, %1, %cst [2] : vector<4x16x16xf32> to vector<4x16xf32>
    %3 = tpu.transpose %2, [1, 0] : vector<4x16xf32> -> vector<16x4xf32>
    %cst_3 = arith.constant 6.250000e-02 : f32
    %4 = vector.broadcast %cst_3 : f32 to vector<16x4xf32>
    %5 = arith.mulf %3, %4 : vector<16x4xf32>
    %c0_4 = arith.constant 0 : index
    %c0_5 = arith.constant 0 : index
    %c0_6 = arith.constant 0 : index
    %6 = vector.load %arg3[%c0_4, %c0_5, %c0_6] : memref<1x16x4xf32, #tpu.memory_space<vmem>>, vector<1x16x4xf32>
    %7 = vector.shape_cast %6 : vector<1x16x4xf32> to vector<16x4xf32>
    %8 = vector.shape_cast %5 : vector<16x4xf32> to vector<1x16x4xf32>
    tpu.vector_store %arg3[%c0_4, %c0_5, %c0_6], %8 {strides = array<i32>} : memref<1x16x4xf32, #tpu.memory_space<vmem>>, vector<1x16x4xf32>,
    %cst_7 = arith.constant dense<0.000000e+00> : vector<4x16xf32>
    %9 = vector.multi_reduction <add>, %1, %cst_7 [1] : vector<4x16x16xf32> to vector<4x16xf32>
    %c0_i32 = arith.constant 0 : i32
    %10 = arith.cmpi eq, %arg1, %c0_i32 : i32
    %11 = arith.extui %10 : i1 to i32
    %c0_i32_8 = arith.constant 0 : i32
    %12 = arith.cmpi ne, %11, %c0_i32_8 : i32
    scf.if %12 {
      %cst_17 = arith.constant 0.000000e+00 : f32
      %20 = vector.broadcast %cst_17 : f32 to vector<16x4xf32>
      %c0_18 = arith.constant 0 : index
      %c0_19 = arith.constant 0 : index
      %c0_20 = arith.constant 0 : index
      %c0_21 = arith.constant 0 : index
      %21 = vector.load %arg4[%c0_18, %c0_19, %c0_20, %c0_21] : memref<1x1x16x4xf32, #tpu.memory_space<vmem>>, vector<1x1x16x4xf32>
      %22 = vector.shape_cast %21 : vector<1x1x16x4xf32> to vector<16x4xf32>
      %23 = vector.shape_cast %20 : vector<16x4xf32> to vector<1x1x16x4xf32>
      tpu.vector_store %arg4[%c0_18, %c0_19, %c0_20, %c0_21], %23 {strides = array<i32>} : memref<1x1x16x4xf32, #tpu.memory_space<vmem>>, vector<1x1x16x4xf32>,
    } else {
    }
    %c0_9 = arith.constant 0 : index
    %c0_10 = arith.constant 0 : index
    %c0_11 = arith.constant 0 : index
    %c0_12 = arith.constant 0 : index
    %13 = vector.load %arg4[%c0_9, %c0_10, %c0_11, %c0_12] : memref<1x1x16x4xf32, #tpu.memory_space<vmem>>, vector<1x1x16x4xf32>
    %14 = vector.shape_cast %13 : vector<1x1x16x4xf32> to vector<16x4xf32>
    %15 = tpu.transpose %9, [1, 0] : vector<4x16xf32> -> vector<16x4xf32>
    %16 = arith.addf %14, %15 : vector<16x4xf32>
    %c0_13 = arith.constant 0 : index
    %c0_14 = arith.constant 0 : index
    %c0_15 = arith.constant 0 : index
    %c0_16 = arith.constant 0 : index
    %17 = vector.load %arg4[%c0_13, %c0_14, %c0_15, %c0_16] : memref<1x1x16x4xf32, #tpu.memory_space<vmem>>, vector<1x1x16x4xf32>
    %18 = vector.shape_cast %17 : vector<1x1x16x4xf32> to vector<16x4xf32>
    %19 = vector.shape_cast %16 : vector<16x4xf32> to vector<1x1x16x4xf32>
    tpu.vector_store %arg4[%c0_13, %c0_14, %c0_15, %c0_16], %19 {strides = array<i32>} : memref<1x1x16x4xf32, #tpu.memory_space<vmem>>, vector<1x1x16x4xf32>,
    return
  }
  func.func @transform_0(%arg0: i32, %arg1: i32) -> (i32, i32, i32, i32) {
    %c0_i32 = arith.constant 0 : i32
    %c0_i32_0 = arith.constant 0 : i32
    %c0_i32_1 = arith.constant 0 : i32
    return %arg0, %c0_i32, %arg1, %c0_i32_0 : i32, i32, i32, i32
  }
  func.func @transform_1(%arg0: i32, %arg1: i32) -> (i32, i32, i32) {
    %c0_i32 = arith.constant 0 : i32
    %c0_i32_0 = arith.constant 0 : i32
    return %arg0, %arg1, %c0_i32 : i32, i32, i32
  }
  func.func @transform_2(%arg0: i32, %arg1: i32) -> (i32, i32, i32, i32) {
    %c0_i32 = arith.constant 0 : i32
    %c0_i32_0 = arith.constant 0 : i32
    %c0_i32_1 = arith.constant 0 : i32
    %c0_i32_2 = arith.constant 0 : i32
    return %arg0, %c0_i32, %c0_i32_0, %c0_i32_1 : i32, i32, i32, i32
  }
}

</mosaic_0001>

<llo_original>
// kernel: tpu_custom_call.1
$region0: #{tpu_custom_call.1}
  #allocation0 [shape = 'u32[]', space=smem, size = 0x4, offset = 0x4, fixed_abs, tag = 'smem constant byte address 0x4 - core index']
  #allocation1 [shape = 'u32[72,128]{1,0:T(1,128)}', space=vmem, size = 0x9000, scoped, tag = 'internal scratch']
  %s0 = inlined_call_operand.hbm [shape: f32[2,4,16,16], index: 0, kind: input, shape index: {}]
  %s1 = inlined_call_operand.vmem [shape: f32[2,16,4], index: 1, kind: output, shape index: {0}]
  %s2 = inlined_call_operand.vmem [shape: f32[2,1,16,4], index: 2, kind: output, shape index: {1}]
  %3 = xla_tuple %s1, %s2
  %s4 = sld [smem:[#allocation0]]
  $region53: #{tpu_custom_call.1} parent=0
    _
  %s6 = ssub.s32 1, %s4
  %s7 = scalar_select 0, %s6, %s4
  $region1: #{tpu_custom_call.1} parent=0
    #allocation2 [shape = 'u8[65536]{0}', space=vmem, size = 0x10000, scoped, tag = 'input window, operand 0']
    #allocation3 [shape = 's32[2]{0}', space=sflag, size = 0x8, scoped, tag = 'scoped memory for tpu_custom_call.1']
    %8 = vsyncpa [#allocation3], 0
    %s9 = scalar_lea.sflag [#allocation3], 1
    %10 = vsyncpa %s9, 0
    loop: start=0, step=1, limit=4
    $region2: #{tpu_custom_call.1} parent=1 // loop_pre_header
      _
    $region3: #{tpu_custom_call.1} parent=1 // loop_header
      %s12 = sphi 0, %s16
      %p13 = scmp.ge.s32.totalorder %s12, 4
      %s19 = sphi 0, %s31
      %s20 = sphi 0, %s27
      %s21 = sphi 0, %s19
      %s22 = sphi 0, %s20
      %s23 = sphi 0, %s21
      %s24 = sphi 0, %s22
      %s36 = sphi 0, %s38
      %s39 = sphi 0, %s36
      %s40 = sphi 0, %s39
      %s56 = sphi 0, %s40
      %s64 = sphi 0, %s66
      %s67 = sphi 0, %s64
      %s68 = sphi 0, %s67
      %s84 = sphi 0, %s68
      %s90 = sphi 0, %s92
      %s93 = sphi 0, %s90
      %s94 = sphi 0, %s93
      %s110 = sphi 0, %s94
    $region4: #{tpu_custom_call.1} parent=1 // loop_header_branch
      %15 = sbr.rel (%p13) target = $region8
    $region5: #{tpu_custom_call.1} parent=1 // loop_body
      %s17 = ssub.s32 %s12, 1
      %s18 = ssub.s32 %s12, 2
      %s25 = sadd.s32 1, %s20
      %p26 = scmp.ge.s32.totalorder %s25, 1
      %s27 = scalar_select %p26, 0, %s25
      %s28 = sadd.s32 1, %s19
      %s29 = scalar_select %p26, %s28, %s19
      %p30 = scmp.ge.s32.totalorder %s29, 2
      %s31 = scalar_select %p30, 0, %s29
      %s32 = ssub.s32 %s19, %s31
      %s33 = ssub.s32 %s20, %s27
      %s34 = sor.u32 %s32, %s33
      %p35 = scmp.eq.s32.totalorder %s34, 0
      %s37 = sadd.s32 %s36, 1
      %s38 = scalar_select %p35, %s36, %s37
      %p41 = pneg %p35
      %p42 = scmp.eq.s32.totalorder %s12, 1
      %p43 = por %p41, %p42
      %p44 = scmp.ne.s32.totalorder %s36, %s39
      %p45 = scmp.eq.s32.totalorder %s12, 0
      %p46 = por %p44, %p45
      %p47 = scmp.ne.s32.totalorder %s36, %s39
      %p48 = scmp.eq.s32.totalorder %s17, 1
      %p49 = por %p47, %p48
      %p50 = scmp.ne.s32.totalorder %s39, %s40
      %p51 = scmp.eq.s32.totalorder %s17, 0
      %p52 = por %p50, %p51
      %p53 = scmp.ne.s32.totalorder %s39, %s40
      %p54 = scmp.eq.s32.totalorder %s18, 1
      %p55 = por %p53, %p54
      %p57 = scmp.ne.s32.totalorder %s40, %s56
      %p58 = scmp.eq.s32.totalorder %s18, 0
      %p59 = por %p57, %p58
      %s60 = ssub.s32 %s19, %s31
      %s61 = ssub.s32 %s20, %s27
      %s62 = sor.u32 %s60, %s61
      %p63 = scmp.eq.s32.totalorder %s62, 0
      %s65 = sadd.s32 %s64, 1
      %s66 = scalar_select %p63, %s64, %s65
      %p69 = pneg %p63
      %p70 = scmp.eq.s32.totalorder %s12, 1
      %p71 = por %p69, %p70
      %p72 = scmp.ne.s32.totalorder %s64, %s67
      %p73 = scmp.eq.s32.totalorder %s12, 0
      %p74 = por %p72, %p73
      %p75 = scmp.ne.s32.totalorder %s64, %s67
      %p76 = scmp.eq.s32.totalorder %s17, 1
      %p77 = por %p75, %p76
      %p78 = scmp.ne.s32.totalorder %s67, %s68
      %p79 = scmp.eq.s32.totalorder %s17, 0
      %p80 = por %p78, %p79
      %p81 = scmp.ne.s32.totalorder %s67, %s68
      %p82 = scmp.eq.s32.totalorder %s18, 1
      %p83 = por %p81, %p82
      %p85 = scmp.ne.s32.totalorder %s68, %s84
      %p86 = scmp.eq.s32.totalorder %s18, 0
      %p87 = por %p85, %p86
      %s88 = ssub.s32 %s19, %s31
      %p89 = scmp.eq.s32.totalorder %s88, 0
      %s91 = sadd.s32 %s90, 1
      %s92 = scalar_select %p89, %s90, %s91
      %p95 = pneg %p89
      %p96 = scmp.eq.s32.totalorder %s12, 1
      %p97 = por %p95, %p96
      %p98 = scmp.ne.s32.totalorder %s90, %s93
      %p99 = scmp.eq.s32.totalorder %s12, 0
      %p100 = por %p98, %p99
      %p101 = scmp.ne.s32.totalorder %s90, %s93
      %p102 = scmp.eq.s32.totalorder %s17, 1
      %p103 = por %p101, %p102
      %p104 = scmp.ne.s32.totalorder %s93, %s94
      %p105 = scmp.eq.s32.totalorder %s17, 0
      %p106 = por %p104, %p105
      %p107 = scmp.ne.s32.totalorder %s93, %s94
      %p108 = scmp.eq.s32.totalorder %s18, 1
      %p109 = por %p107, %p108
      %p111 = scmp.ne.s32.totalorder %s94, %s110
      %p112 = scmp.eq.s32.totalorder %s18, 0
      %p113 = por %p111, %p112
      %p114 = scmp.le.s32.totalorder 1, %s12
      %p115 = scmp.lt.s32.totalorder %s12, 3
      %p116 = pnand %p114, %p115
      %p117 = pneg %p116
      // Predicated region
      $region9: #{tpu_custom_call.1} parent=5 // pred_check
        _
      $region10: #{tpu_custom_call.1} parent=5 // pred_check_branch
        %119 = sbr.rel (%p116) target = $region12
      $region11: #{tpu_custom_call.1} parent=5 // pred_region
        %s120 = ssub.s32 %s12, 1
      $region12: #{tpu_custom_call.1} parent=5 // pred_fallthru
        _
      %p121 = scmp.lt.s32.totalorder %s12, 2
      // Predicated region
      $region13: #{tpu_custom_call.1} parent=5 // pred_check
        %p122 = pneg %p121
      $region14: #{tpu_custom_call.1} parent=5 // pred_check_branch
        %124 = sbr.rel (%p122) target = $region16
      $region15: #{tpu_custom_call.1} parent=5 // pred_region
        // Predicated region
        $region17: #{tpu_custom_call.1} parent=15 // pred_check
          %p125 = pneg %p46
        $region18: #{tpu_custom_call.1} parent=15 // pred_check_branch
          %127 = sbr.rel (%p125) target = $region20
        $region19: #{tpu_custom_call.1} parent=15 // pred_region
          %s128 = sand.u32 %s36, 1
          %s129 = scalar_lea.sflag [#allocation3], %s128
          %s130 = sand.u32 %s36, 1
          %s131 = smul.addr %s130, 64
          %s132 = scalar_lea.vmem [#allocation2], %s131
          %s133 = smul.u32 2, %s20
          %135 = vsyncadd %s129, 0
          %s136 = smul.addr %s19, 8
          %s137 = sadd.s32 %s133, %s136
          %s138 = smul.addr %s137, 8
          %s139 = scalar_lea.hbm %s0, %s138
          %s140 = sshll.u32 %s139, 4
          %s141 = int_to_ptr.hbm [resolvable:$true] %s140
          %s142 = sshll.u32 %s132, 4
          %s143 = int_to_ptr.vmem [resolvable:$true] %s142
          %148 = dma.hbm_to_vmem [thread:$0]  %s141, 1024, %s143, %s129, 128, 128, 8
        $region20: #{tpu_custom_call.1} parent=15 // pred_fallthru
          _
      $region16: #{tpu_custom_call.1} parent=5 // pred_fallthru
        _
      %p149 = scmp.le.s32.totalorder 1, %s12
      %p150 = scmp.lt.s32.totalorder %s12, 3
      %p151 = pnand %p149, %p150
      %p152 = pneg %p151
      // Predicated region
      $region21: #{tpu_custom_call.1} parent=5 // pred_check
        _
      $region22: #{tpu_custom_call.1} parent=5 // pred_check_branch
        %154 = sbr.rel (%p151) target = $region24
      $region23: #{tpu_custom_call.1} parent=5 // pred_region
        %s155 = ssub.s32 %s12, 1
        %s156 = sand.u32 %s39, 1
        %s157 = scalar_lea.sflag [#allocation3], %s156
        %s158 = sand.u32 %s39, 1
        %s159 = smul.addr %s158, 64
        %s160 = scalar_lea.vmem [#allocation2], %s159
        // Predicated region
        $region25: #{tpu_custom_call.1} parent=23 // pred_check
          %p161 = pneg %p52
        $region26: #{tpu_custom_call.1} parent=23 // pred_check_branch
          %163 = sbr.rel (%p161) target = $region28
        $region27: #{tpu_custom_call.1} parent=23 // pred_region
          %165 = dma.done %s157, 1024
        $region28: #{tpu_custom_call.1} parent=23 // pred_fallthru
          _
        %s166 = sand.u32 %s39, 1
        %s167 = scalar_lea.sflag [#allocation3], %s166
        %s168 = sand.u32 %s39, 1
        %s169 = smul.addr %s168, 64
        %s170 = scalar_lea.vmem [#allocation2], %s169
        %p171 = pneg %p52
        %p172 = pneg %p49
        %p173 = pneg %p80
        %p174 = pneg %p77
        %s175 = smul.u32 2, %s22
        %p176 = scmp.lt.s32.totalorder %s21, 1
        %s177 = scalar_select %p176, %s21, 1
        %p178 = scmp.lt.s32.totalorder %s175, 1
        %s179 = scalar_select %p178, %s175, 1
        %s180 = smul.addr %s177, 2
        %s181 = sadd.s32 %s179, %s180
        %s182 = smul.addr %s181, 8
        %s183 = scalar_lea.vmem %s1, %s182
        %p184 = pneg %p106
        %p185 = pneg %p103
        %p186 = scmp.lt.s32.totalorder %s21, 1
        %s187 = scalar_select %p186, %s21, 1
        %s188 = smul.addr %s187, 2
        %s189 = smul.addr %s188, 8
        %s190 = scalar_lea.vmem %s2, %s189
        %s191 = smul.u32 2, %s22
        %s192 = smul.u32 2, %s22
        %p193 = scmp.lt.s32.totalorder %s21, 1
        %s194 = scalar_select %p193, %s21, 1
        %p195 = scmp.lt.s32.totalorder %s192, 1
        %s196 = scalar_select %p195, %s192, 1
        %s197 = smul.addr %s194, 2
        %s198 = sadd.s32 %s196, %s197
        %s199 = smul.addr %s198, 8
        %s200 = scalar_lea.vmem %s1, %s199
        %s201 = smul.u32 2, %s22
        %p202 = scmp.lt.s32.totalorder %s21, 1
        %s203 = scalar_select %p202, %s21, 1
        %s204 = smul.addr %s203, 2
        %s205 = smul.addr %s204, 8
        %s206 = scalar_lea.vmem %s2, %s205
        %v207 = vld [vmem:[%s160] sm:$0xff]
        %v208 = vld [vmem:[%s160 + $0x8] sm:$0xff]
        %v209 = vld [vmem:[%s160 + $0x10] sm:$0xff]
        %v210 = vld [vmem:[%s160 + $0x18] sm:$0xff]
        %v211 = vld [vmem:[%s160 + $0x20] sm:$0xff]
        %v212 = vld [vmem:[%s160 + $0x28] sm:$0xff]
        %v213 = vld [vmem:[%s160 + $0x30] sm:$0xff]
        %v214 = vld [vmem:[%s160 + $0x38] sm:$0xff]
        %vm215 = vcmask 130048
        %v216 = vsel %vm215, %v207, 0.0
        %217 = vadd.xlane.f32.xlu0 %v216
        %v218 = vpop.xlane.xlu0 %217
        %v219 = vsel %vm215, %v208, 0.0
        %220 = vadd.xlane.f32.xlu0 %v219
        %v221 = vpop.xlane.xlu0 %220
        %v222 = vsel %vm215, %v209, 0.0
        %223 = vadd.xlane.f32.xlu0 %v222
        %v224 = vpop.xlane.xlu0 %223
        %v225 = vsel %vm215, %v210, 0.0
        %226 = vadd.xlane.f32.xlu0 %v225
        %v227 = vpop.xlane.xlu0 %226
        %v228 = vsel %vm215, %v211, 0.0
        %229 = vadd.xlane.f32.xlu0 %v228
        %v230 = vpop.xlane.xlu0 %229
        %v231 = vsel %vm215, %v212, 0.0
        %232 = vadd.xlane.f32.xlu0 %v231
        %v233 = vpop.xlane.xlu0 %232
        %v234 = vsel %vm215, %v213, 0.0
        %235 = vadd.xlane.f32.xlu0 %v234
        %v236 = vpop.xlane.xlu0 %235
        %v237 = vsel %vm215, %v214, 0.0
        %238 = vadd.xlane.f32.xlu0 %v237
        %v239 = vpop.xlane.xlu0 %238
        %v248 = vlaneseq
        %v249 = vand.u32 %v248, 127
        %v250 = vperm.slane %v218, %v249
        %v251 = vadd.s32 %v249, 4294967288
        %v252 = vperm.slane %v221, %v251
        %vm253 = vcmask 130112
        %v254 = vsel %vm253, %v252, %v250
        %v255 = vperm.slane %v224, %v249
        %v256 = vperm.slane %v227, %v251
        %v257 = vsel %vm253, %v256, %v255
        %v258 = vperm.slane %v230, %v249
        %v259 = vperm.slane %v233, %v251
        %v260 = vsel %vm253, %v259, %v258
        %v261 = vperm.slane %v236, %v249
        %v262 = vperm.slane %v239, %v251
        %v263 = vsel %vm253, %v262, %v261
        %vm264 = vcmask 1041409
        %v265 = vsel %vm264, %v257, %v254
        %vm266 = vcmask 1042434
        %v267 = vsel %vm266, %v260, %v265
        %vm268 = vcmask 1043459
        %v269 = vsel %vm268, %v263, %v267
        %271 = vxpose.xlu0.b32.start [1/16] %v269, 128
        %272 = vxpose.xlu0.b32.cont [2/16] 0.0, 128
        %273 = vxpose.xlu0.b32.cont [3/16] 0.0, 128
        %274 = vxpose.xlu0.b32.cont [4/16] 0.0, 128
        %275 = vxpose.xlu0.b32.cont [5/16] 0.0, 128
        %276 = vxpose.xlu0.b32.cont [6/16] 0.0, 128
        %277 = vxpose.xlu0.b32.cont [7/16] 0.0, 128
        %278 = vxpose.xlu0.b32.cont [8/16] 0.0, 128
        %279 = vxpose.xlu0.b32.cont [9/16] 0.0, 128
        %280 = vxpose.xlu0.b32.cont [10/16] 0.0, 128
        %281 = vxpose.xlu0.b32.cont [11/16] 0.0, 128
        %282 = vxpose.xlu0.b32.cont [12/16] 0.0, 128
        %283 = vxpose.xlu0.b32.cont [13/16] 0.0, 128
        %284 = vxpose.xlu0.b32.cont [14/16] 0.0, 128
        %285 = vxpose.xlu0.b32.cont [15/16] 0.0, 128
        %286 = vxpose.xlu0.b32.end [16/16] 0.0, 128
        %v287 = vpop.trf.xlu0
        %v288 = vpop.trf.xlu0
        %v289 = vpop.trf.xlu0
        %v290 = vpop.trf.xlu0
        %v291 = vpop.trf.xlu0
        %v292 = vpop.trf.xlu0
        %v293 = vpop.trf.xlu0
        %v294 = vpop.trf.xlu0
        %v295 = vpop.trf.xlu0
        %v296 = vpop.trf.xlu0
        %v297 = vpop.trf.xlu0
        %v298 = vpop.trf.xlu0
        %v299 = vpop.trf.xlu0
        %v300 = vpop.trf.xlu0
        %v301 = vpop.trf.xlu0
        %v302 = vpop.trf.xlu0
        %v303 = vmul.f32 %v287, 0.0625
        %v304 = vmul.f32 %v288, 0.0625
        %vm305 = vcmask 31744
        %306 = vst.msk [vmem:[%s200] sm:$0xff] %vm305, %v303
        %307 = vst.msk [vmem:[%s200 + $0x8] sm:$0xff] %vm305, %v304
        %v308 = vadd.f32 %v216, %v219
        %v309 = vrot.slane %v308, 4
        %v310 = vadd.f32 %v308, %v309
        %v311 = vrot.slane %v310, 2
        %v312 = vadd.f32 %v310, %v311
        %v313 = vrot.slane %v312, 1
        %v314 = vadd.f32 %v312, %v313
        %v315 = vadd.f32 %v222, %v225
        %v316 = vrot.slane %v315, 4
        %v317 = vadd.f32 %v315, %v316
        %v318 = vrot.slane %v317, 2
        %v319 = vadd.f32 %v317, %v318
        %v320 = vrot.slane %v319, 1
        %v321 = vadd.f32 %v319, %v320
        %v322 = vadd.f32 %v228, %v231
        %v323 = vrot.slane %v322, 4
        %v324 = vadd.f32 %v322, %v323
        %v325 = vrot.slane %v324, 2
        %v326 = vadd.f32 %v324, %v325
        %v327 = vrot.slane %v326, 1
        %v328 = vadd.f32 %v326, %v327
        %v329 = vadd.f32 %v234, %v237
        %v330 = vrot.slane %v329, 4
        %v331 = vadd.f32 %v329, %v330
        %v332 = vrot.slane %v331, 2
        %v333 = vadd.f32 %v331, %v332
        %v334 = vrot.slane %v333, 1
        %v335 = vadd.f32 %v333, %v334
        %p336 = scmp.eq.s32.totalorder %s22, 0
        // Predicated region
        $region29: #{tpu_custom_call.1} parent=23 // pred_check
          %p337 = pneg %p336
        $region30: #{tpu_custom_call.1} parent=23 // pred_check_branch
          %339 = sbr.rel (%p337) target = $region32
        $region31: #{tpu_custom_call.1} parent=23 // pred_region
          %340 = vst.msk [vmem:[%s206] sm:$0xff] %vm305, 0.0
          %341 = vst.msk [vmem:[%s206 + $0x8] sm:$0xff] %vm305, 0.0
        $region32: #{tpu_custom_call.1} parent=23 // pred_fallthru
          _
        %v342 = vld [vmem:[%s206] sm:$0xff]
        %v343 = vld [vmem:[%s206 + $0x8] sm:$0xff]
        %v348 = vsel %vm264, %v321, %v314
        %v349 = vsel %vm266, %v328, %v348
        %v350 = vsel %vm268, %v335, %v349
        %352 = vxpose.xlu0.b32.start [1/16] %v350, 128
        %353 = vxpose.xlu0.b32.cont [2/16] 0.0, 128
        %354 = vxpose.xlu0.b32.cont [3/16] 0.0, 128
        %355 = vxpose.xlu0.b32.cont [4/16] 0.0, 128
        %356 = vxpose.xlu0.b32.cont [5/16] 0.0, 128
        %357 = vxpose.xlu0.b32.cont [6/16] 0.0, 128
        %358 = vxpose.xlu0.b32.cont [7/16] 0.0, 128
        %359 = vxpose.xlu0.b32.cont [8/16] 0.0, 128
        %360 = vxpose.xlu0.b32.cont [9/16] 0.0, 128
        %361 = vxpose.xlu0.b32.cont [10/16] 0.0, 128
        %362 = vxpose.xlu0.b32.cont [11/16] 0.0, 128
        %363 = vxpose.xlu0.b32.cont [12/16] 0.0, 128
        %364 = vxpose.xlu0.b32.cont [13/16] 0.0, 128
        %365 = vxpose.xlu0.b32.cont [14/16] 0.0, 128
        %366 = vxpose.xlu0.b32.cont [15/16] 0.0, 128
        %367 = vxpose.xlu0.b32.end [16/16] 0.0, 128
        %v368 = vpop.trf.xlu0
        %v369 = vpop.trf.xlu0
        %v370 = vpop.trf.xlu0
        %v371 = vpop.trf.xlu0
        %v372 = vpop.trf.xlu0
        %v373 = vpop.trf.xlu0
        %v374 = vpop.trf.xlu0
        %v375 = vpop.trf.xlu0
        %v376 = vpop.trf.xlu0
        %v377 = vpop.trf.xlu0
        %v378 = vpop.trf.xlu0
        %v379 = vpop.trf.xlu0
        %v380 = vpop.trf.xlu0
        %v381 = vpop.trf.xlu0
        %v382 = vpop.trf.xlu0
        %v383 = vpop.trf.xlu0
        %v384 = vadd.f32 %v342, %v368
        %v385 = vadd.f32 %v343, %v369
        %386 = vst.msk [vmem:[%s206] sm:$0xff] %vm305, %v384
        %387 = vst.msk [vmem:[%s206 + $0x8] sm:$0xff] %vm305, %v385
        %s388 = smul.u32 2, %s22
        %p389 = scmp.lt.s32.totalorder %s21, 1
        %s390 = scalar_select %p389, %s21, 1
        %p391 = scmp.lt.s32.totalorder %s388, 1
        %s392 = scalar_select %p391, %s388, 1
        %s393 = smul.addr %s390, 2
        %s394 = sadd.s32 %s392, %s393
        %s395 = smul.addr %s394, 8
        %s396 = scalar_lea.vmem %s1, %s395
        %p397 = scmp.lt.s32.totalorder %s21, 1
        %s398 = scalar_select %p397, %s21, 1
        %s399 = smul.addr %s398, 2
        %s400 = smul.addr %s399, 8
        %s401 = scalar_lea.vmem %s2, %s400
        // Predicated region
        $region33: #{tpu_custom_call.1} parent=23 // pred_check
          %p402 = pneg %p77
        $region34: #{tpu_custom_call.1} parent=23 // pred_check_branch
          %404 = sbr.rel (%p402) target = $region36
        $region35: #{tpu_custom_call.1} parent=23 // pred_region
          %s405 = smul.u32 2, %s22
        $region36: #{tpu_custom_call.1} parent=23 // pred_fallthru
          _
        // Predicated region
        $region37: #{tpu_custom_call.1} parent=23 // pred_check
          %p406 = pneg %p103
        $region38: #{tpu_custom_call.1} parent=23 // pred_check_branch
          %408 = sbr.rel (%p406) target = $region40
        $region39: #{tpu_custom_call.1} parent=23 // pred_region
          _
        $region40: #{tpu_custom_call.1} parent=23 // pred_fallthru
          _
      $region24: #{tpu_custom_call.1} parent=5 // pred_fallthru
        _
      %p409 = scmp.le.s32.totalorder 2, %s12
      // Predicated region
      $region41: #{tpu_custom_call.1} parent=5 // pred_check
        %p410 = pneg %p409
      $region42: #{tpu_custom_call.1} parent=5 // pred_check_branch
        %412 = sbr.rel (%p410) target = $region44
      $region43: #{tpu_custom_call.1} parent=5 // pred_region
        %s413 = ssub.s32 %s12, 2
        // Predicated region
        $region45: #{tpu_custom_call.1} parent=43 // pred_check
          %p414 = pneg %p83
        $region46: #{tpu_custom_call.1} parent=43 // pred_check_branch
          %416 = sbr.rel (%p414) target = $region48
        $region47: #{tpu_custom_call.1} parent=43 // pred_region
          %s417 = smul.u32 2, %s24
          %p418 = scmp.lt.s32.totalorder %s23, 1
          %s419 = scalar_select %p418, %s23, 1
          %p420 = scmp.lt.s32.totalorder %s417, 1
          %s421 = scalar_select %p420, %s417, 1
          %s422 = smul.addr %s419, 2
          %s423 = sadd.s32 %s421, %s422
          %s424 = smul.addr %s423, 8
          %s425 = scalar_lea.vmem %s1, %s424
        $region48: #{tpu_custom_call.1} parent=43 // pred_fallthru
          _
        // Predicated region
        $region49: #{tpu_custom_call.1} parent=43 // pred_check
          %p426 = pneg %p109
        $region50: #{tpu_custom_call.1} parent=43 // pred_check_branch
          %428 = sbr.rel (%p426) target = $region52
        $region51: #{tpu_custom_call.1} parent=43 // pred_region
          %p429 = scmp.lt.s32.totalorder %s23, 1
          %s430 = scalar_select %p429, %s23, 1
          %s431 = smul.addr %s430, 2
          %s432 = smul.addr %s431, 8
          %s433 = scalar_lea.vmem %s2, %s432
        $region52: #{tpu_custom_call.1} parent=43 // pred_fallthru
          _
      $region44: #{tpu_custom_call.1} parent=5 // pred_fallthru
        _
    $region6: #{tpu_custom_call.1} parent=1 // loop_footer
      %s16 = sadd.s32 1, %s12
    $region7: #{tpu_custom_call.1} parent=1 // loop_footer_branch
      %11 = sbr.rel target = $region3
    $region8: #{tpu_custom_call.1} parent=1 // loop_exit
      _
    %434 = vsyncpa [#allocation3], 1
    %s435 = scalar_lea.sflag [#allocation3], 1
    %436 = vsyncpa %s435, 1

</llo_original>
